<compile_context>
chip_gen: v7x
topology: tpu7x:2x2x1
jax: 0.10.0
libtpu: 0.0.40
codegen_flags: <defaults>
</compile_context>

<pallas_src>
import functools

import jax
import jax.numpy as jnp
from jax import lax
from jax.experimental import pallas as pl
from jax.experimental.pallas import tpu as pltpu


def _round_up(x, m):
    return (x + m - 1) // m * m


def _conv_block_kernel(p_ref, w_ref, b_ref, a_ref, o_ref, *, activation):
    # p_ref : (CKp, M_band)    im2col patches (one lane-band of the batch)
    # w_ref : (Cout_p, CKp)    BN-folded weights
    # b_ref : (Cout_p, 1)      BN-folded bias (f32)
    # a_ref : (1, 1) in SMEM   PReLU slope (nn.PReLU() shared-slope default)
    # o_ref : (Cout_p, M_band) lane-dense output band (f32)
    y = jnp.dot(w_ref[...], p_ref[...], preferred_element_type=jnp.float32)
    y = y + b_ref[...]                               # (Cout_p, M_band) + (Cout_p, 1)

    if activation == "prelu":
        a = a_ref[0, 0]
        y = jnp.where(y >= 0, y, a * y)
    elif activation == "leakyrelu":
        y = jnp.where(y >= 0, y, 0.2 * y)
    elif activation == "tanh":
        y = jnp.tanh(y)

    o_ref[...] = y.astype(o_ref.dtype)


def convolutional_block(x_nchw, params, *, kernel_size, stride=1,
                        batch_norm=False, activation=None, eps=1e-5,
                        compute_dtype=None, band_lanes=512):
    """Pallas equivalent of ConvolutionalBlock.forward (NCHW in / NCHW out).

    compute_dtype: dtype of the matmul operands (None -> keep x.dtype).
                   Use jnp.bfloat16 on v6e/v7x to halve HBM/VMEM traffic;
                   accumulation and the epilogue stay float32.
    band_lanes:    lane-band size cap (multiple of 128); 512 keeps the
                   (Cout, band) result + streamed patches well inside vregs.
    """
    if activation is not None:
        activation = activation.lower()
        assert activation in {"prelu", "leakyrelu", "tanh"}
    K = kernel_size
    N, Cin, H, W = x_nchw.shape
    w = params["w"].astype(jnp.float32)              # (K, K, Cin, Cout)
    b = params["b"].astype(jnp.float32)              # (1, Cout)
    Cout = w.shape[3]
    pad = K // 2
    Ho = (H + 2 * pad - K) // stride + 1
    Wo = (W + 2 * pad - K) // stride + 1
    M = Ho * Wo                                      # compact output length / image

    # ---- fold eval-mode BatchNorm into the conv weight / bias --------------
    if batch_norm:
        scale = params["gamma"][0].astype(jnp.float32) * lax.rsqrt(
            params["var"][0].astype(jnp.float32) + eps)             # (Cout,)
        shift = params["beta"][0].astype(jnp.float32) - \
            params["mean"][0].astype(jnp.float32) * scale
        w = w * scale[None, None, None, :]
        b_vec = b[0] * scale + shift
    else:
        b_vec = b[0]

    if activation == "prelu":
        assert "prelu_a" in params, "activation='prelu' requires params['prelu_a']"
    a_smem = jnp.reshape(
        params.get("prelu_a", jnp.zeros((1, 1), jnp.float32)).astype(jnp.float32),
        (1, 1))

    cdt = jnp.dtype(compute_dtype) if compute_dtype is not None else x_nchw.dtype

    # ---- contraction-friendly padded shapes ---------------------------------
    CK = K * K * Cin
    CKp = _round_up(CK, 8)                           # sublane-aligned contraction
    Cout_p = _round_up(Cout, 8)

    # (Cout, K*K*Cin) weight, rows ordered (kh, kw, cin), zero-padded.
    w_mat = jnp.transpose(w, (3, 0, 1, 2)).reshape(Cout, CK)
    w_mat = jnp.pad(w_mat, ((0, Cout_p - Cout), (0, CKp - CK))).astype(cdt)
    b_col = jnp.pad(b_vec, (0, Cout_p - Cout)).reshape(Cout_p, 1)    # stays f32

    # ---- compact im2col, batch folded onto the lane axis --------------------
    xc = x_nchw if x_nchw.dtype == cdt else x_nchw.astype(cdt)
    xp = jnp.pad(xc, ((0, 0), (0, 0), (pad, pad), (pad, pad)))       # (N,Cin,Hp,Wp)
    cols = []
    for kh in range(K):
        for kw in range(K):
            patch = xp[:, :,
                       kh:kh + stride * (Ho - 1) + 1:stride,
                       kw:kw + stride * (Wo - 1) + 1:stride]         # (N,Cin,Ho,Wo)
            cols.append(patch.reshape(N, Cin, M))
    patches = jnp.concatenate(cols, axis=1)                          # (N, CK, M)
    patches = jnp.pad(patches, ((0, 0), (0, CKp - CK), (0, 0)))
    patches = jnp.transpose(patches, (1, 0, 2)).reshape(CKp, N * M)  # (CKp, Mtot)

    # ---- lane-dense band tiling (multiple of 128) ---------------------------
    Mtot = N * M
    t = _round_up(Mtot, 128) // 128
    tb = max(band_lanes // 128, 1)
    n_bands = pl.cdiv(t, tb)
    M_band = 128 * pl.cdiv(t, n_bands)
    Mtot_p = M_band * n_bands
    patches = jnp.pad(patches, ((0, 0), (0, Mtot_p - Mtot)))

    kernel = functools.partial(_conv_block_kernel, activation=activation)

    # Per-step VMEM is ~2 * (CKp + Cout_p) * M_band * itemsize -> far under the
    # default scoped limit on all generations; set vmem_limit_bytes explicitly
    # if band_lanes is raised for very large images on v5e.
    out_flat = pl.pallas_call(
        kernel,
        out_shape=jax.ShapeDtypeStruct((Cout_p, Mtot_p), jnp.float32),
        grid_spec=pltpu.PrefetchScalarGridSpec(
            num_scalar_prefetch=0,
            grid=(n_bands,),
            in_specs=[
                pl.BlockSpec((CKp, M_band), lambda j: (0, j)),
                # grid-invariant operands (tiny: <2 KiB, double-buffering is fine)
                pl.BlockSpec((Cout_p, CKp), lambda j: (0, 0)),
                pl.BlockSpec((Cout_p, 1), lambda j: (0, 0)),
                pl.BlockSpec(memory_space=pltpu.MemorySpace.SMEM),
            ],
            out_specs=pl.BlockSpec((Cout_p, M_band), lambda j: (0, j)),
        ),
        compiler_params=pltpu.CompilerParams(
            dimension_semantics=("parallel",)),
    )(patches, w_mat, b_col, a_smem)

    out = out_flat[:Cout, :Mtot].reshape(Cout, N, Ho, Wo)
    return jnp.transpose(out, (1, 0, 2, 3))                          # NCHW


def _reference(x_nchw, params, *, kernel_size, stride, batch_norm, activation,
               eps=1e-5):
    """Pure-JAX reference mirroring the PyTorch forward (eval-mode BN)."""
    w, b = params["w"], params["b"]
    pad = kernel_size // 2
    w_oihw = jnp.transpose(w, (3, 2, 0, 1))          # (K,K,Cin,Cout) -> (OC,IC,K,K)
    y = lax.conv_general_dilated(
        x_nchw.astype(jnp.float32), w_oihw,
        window_strides=(stride, stride),
        padding=((pad, pad), (pad, pad)),
        dimension_numbers=("NCHW", "OIHW", "NCHW"),
    )
    y = y + b[0][None, :, None, None]
    if batch_norm:
        g, bt = params["gamma"][0], params["beta"][0]
        mu, vr = params["mean"][0], params["var"][0]
        scale = g * lax.rsqrt(vr + eps)
        shift = bt - mu * scale
        y = y * scale[None, :, None, None] + shift[None, :, None, None]
    if activation == "prelu":
        a = params["prelu_a"][0, 0]
        y = jnp.where(y >= 0, y, a * y)
    elif activation == "leakyrelu":
        y = jnp.where(y >= 0, y, 0.2 * y)
    elif activation == "tanh":
        y = jnp.tanh(y)
    return y


if __name__ == "__main__":
    key = jax.random.PRNGKey(0)
    kx, kwt, kbs, kg, kbt, km, kv = jax.random.split(key, 7)

    # ConvolutionalBlock(4, 8, kernel_size=3, stride=1,
    #                    batch_norm=True, activation='prelu')
    N, Cin, H, W = 2, 4, 16, 16
    Cout, K = 8, 3
    x = jax.random.normal(kx, (N, Cin, H, W), dtype=jnp.float32)
    params = {
        "w": jax.random.normal(kwt, (K, K, Cin, Cout), jnp.float32) * 0.1,
        "b": jax.random.normal(kbs, (1, Cout), jnp.float32) * 0.1,
        "gamma": 1.0 + 0.1 * jax.random.normal(kg, (1, Cout), jnp.float32),
        "beta": 0.1 * jax.random.normal(kbt, (1, Cout), jnp.float32),
        "mean": 0.1 * jax.random.normal(km, (1, Cout), jnp.float32),
        "var": 1.0 + 0.1 * jax.random.uniform(kv, (1, Cout), jnp.float32),
        "prelu_a": jnp.full((1, 1), 0.25, jnp.float32),  # nn.PReLU() default
    }

    # f32 operand path (tight numerical check).
    out = jax.block_until_ready(convolutional_block(
        x, params, kernel_size=K, stride=1, batch_norm=True, activation="prelu"))
    ref = _reference(x, params, kernel_size=K, stride=1,
                     batch_norm=True, activation="prelu")
    assert out.shape == (N, Cout, H, W)
    assert jnp.allclose(out, ref, atol=1e-4, rtol=1e-4), "f32 mismatch vs reference"

    # bf16 operand path (v6e/v7x bandwidth lever), f32 accumulation -> loose check.
    out_bf = jax.block_until_ready(convolutional_block(
        x, params, kernel_size=K, stride=1, batch_norm=True, activation="prelu",
        compute_dtype=jnp.bfloat16))
    assert jnp.allclose(out_bf, ref, atol=6e-2, rtol=6e-2), "bf16 mismatch vs reference"

    # stride-2, kernel-5, no BN, tanh (exercises strided compact im2col path).
    kw2, kb2 = jax.random.split(kwt)
    K2 = 5
    params2 = {
        "w": jax.random.normal(kw2, (K2, K2, Cin, Cout), jnp.float32) * 0.1,
        "b": jax.random.normal(kb2, (1, Cout), jnp.float32) * 0.1,
    }
    out2 = jax.block_until_ready(convolutional_block(
        x, params2, kernel_size=K2, stride=2, batch_norm=False, activation="tanh"))
    ref2 = _reference(x, params2, kernel_size=K2, stride=2,
                      batch_norm=False, activation="tanh")
    assert out2.shape == (N, Cout, 8, 8)
    assert jnp.allclose(out2, ref2, atol=1e-4, rtol=1e-4), "stride-2 mismatch"

    print("KERNEL_OK")
</pallas_src>

<mosaic_0001>
module attributes {stable_mosaic.version = 11 : i64} {
  func.func @_conv_block_kernel(%arg0: i32, %arg1: memref<40x512xf32, #tpu.memory_space<vmem>>, %arg2: memref<8x40xf32, #tpu.memory_space<vmem>>, %arg3: memref<8x1xf32, #tpu.memory_space<vmem>>, %arg4: memref<1x1xf32, #tpu.memory_space<smem>>, %arg5: memref<8x512xf32, #tpu.memory_space<vmem>>) attributes {dimension_semantics = [#tpu.dimension_semantics<parallel>], iteration_bounds = array<i64: 1>, scalar_prefetch = 0 : i64, scratch_operands = 0 : i64, tpu.core_type = #tpu.core_type<tc>, window_params = [{transform_indices = @transform_0, window_bounds = array<i64: 40, 512>}, {pipeline_mode = #tpu.pipeline_mode<synchronous>, transform_indices = @transform_1, window_bounds = array<i64: 8, 40>}, {pipeline_mode = #tpu.pipeline_mode<synchronous>, transform_indices = @transform_2, window_bounds = array<i64: 8, 1>}, {transform_indices = @transform_3, window_bounds = array<i64: 1, 1>}, {transform_indices = @transform_4, window_bounds = array<i64: 8, 512>}]} {
    %c0 = arith.constant 0 : index
    %c0_0 = arith.constant 0 : index
    %0 = vector.load %arg2[%c0, %c0_0] : memref<8x40xf32, #tpu.memory_space<vmem>>, vector<8x40xf32>
    %c0_1 = arith.constant 0 : index
    %c0_2 = arith.constant 0 : index
    %1 = vector.load %arg1[%c0_1, %c0_2] : memref<40x512xf32, #tpu.memory_space<vmem>>, vector<40x512xf32>
    %cst = arith.constant dense<0.000000e+00> : vector<8x512xf32>
    %2 = tpu.matmul %0, %1, %cst {dimension_numbers = #tpu.dot_dimension_numbers<[1], [0], [0], [1], [0, 0, 1, 1], [], []>} : vector<8x40xf32>, vector<40x512xf32>, vector<8x512xf32> -> vector<8x512xf32>
    %c0_3 = arith.constant 0 : index
    %c0_4 = arith.constant 0 : index
    %3 = vector.load %arg3[%c0_3, %c0_4] : memref<8x1xf32, #tpu.memory_space<vmem>>, vector<8x1xf32>
    %4 = vector.broadcast %3 : vector<8x1xf32> to vector<8x512xf32>
    %5 = arith.addf %2, %4 : vector<8x512xf32>
    %c0_5 = arith.constant 0 : index
    %c0_6 = arith.constant 0 : index
    %6 = memref.load %arg4[%c0_5, %c0_6] : memref<1x1xf32, #tpu.memory_space<smem>>
    %cst_7 = arith.constant 0.000000e+00 : f32
    %7 = vector.broadcast %cst_7 : f32 to vector<8x512xf32>
    %8 = arith.cmpf oge, %5, %7 : vector<8x512xf32>
    %9 = vector.broadcast %6 : f32 to vector<8x512xf32>
    %10 = arith.mulf %9, %5 : vector<8x512xf32>
    %11 = arith.select %8, %5, %10 : vector<8x512xi1>, vector<8x512xf32>
    %c0_8 = arith.constant 0 : index
    %c0_9 = arith.constant 0 : index
    %12 = vector.load %arg5[%c0_8, %c0_9] : memref<8x512xf32, #tpu.memory_space<vmem>>, vector<8x512xf32>
    tpu.vector_store %arg5[%c0_8, %c0_9], %11 {strides = array<i32>} : memref<8x512xf32, #tpu.memory_space<vmem>>, vector<8x512xf32>,
    return
  }
  func.func @transform_0(%arg0: i32) -> (i32, i32) {
    %c0_i32 = arith.constant 0 : i32
    %c0_i32_0 = arith.constant 0 : i32
    return %c0_i32, %arg0 : i32, i32
  }
  func.func @transform_1(%arg0: i32) -> (i32, i32) {
    %c0_i32 = arith.constant 0 : i32
    %c0_i32_0 = arith.constant 0 : i32
    %c0_i32_1 = arith.constant 0 : i32
    return %c0_i32, %c0_i32_0 : i32, i32
  }
  func.func @transform_2(%arg0: i32) -> (i32, i32) {
    %c0_i32 = arith.constant 0 : i32
    %c0_i32_0 = arith.constant 0 : i32
    %c0_i32_1 = arith.constant 0 : i32
    return %c0_i32, %c0_i32_0 : i32, i32
  }
  func.func @transform_3(%arg0: i32) -> (i32, i32) {
    %c0_i32 = arith.constant 0 : i32
    %c0_i32_0 = arith.constant 0 : i32
    %c0_i32_1 = arith.constant 0 : i32
    return %c0_i32, %c0_i32_0 : i32, i32
  }
  func.func @transform_4(%arg0: i32) -> (i32, i32) {
    %c0_i32 = arith.constant 0 : i32
    %c0_i32_0 = arith.constant 0 : i32
    return %c0_i32, %arg0 : i32, i32
  }
}

</mosaic_0001>

<llo_original>
// kernel: tpu_custom_call.1
$region0: #{tpu_custom_call.1}
  #allocation0 [shape = 'u32[]', space=smem, size = 0x4, offset = 0x4, fixed_abs, tag = 'smem constant byte address 0x4 - core index']
  #allocation1 [shape = 'u32[144,128]{1,0:T(1,128)}', space=vmem, size = 0x12000, scoped, tag = 'internal scratch']
  #allocation2 [shape = 'f32[1,1]{1,0:T(1,128)S(6)}', space=smem, size = 0x200, scoped, tag = 'scoped memory for tpu_custom_call.1']
  %s0 = inlined_call_operand.hbm [shape: f32[40,512], index: 0, kind: input, shape index: {}]
  %s1 = inlined_call_operand.vmem [shape: f32[8,40], index: 1, kind: input, shape index: {}]
  %s2 = inlined_call_operand.vmem [shape: f32[8,1], index: 2, kind: input, shape index: {}]
  %s3 = inlined_call_operand.<no memory space> [shape: f32[1,1], index: 3, kind: input, shape index: {}]
  %s4 = inlined_call_operand.hbm [shape: f32[8,512], index: 4, kind: output, shape index: {}]
  %s5 = sld [smem:[#allocation0]]
  $region30: #{tpu_custom_call.1} parent=0
    _
  %s7 = ssub.s32 1, %s5
  %s8 = scalar_select 0, %s7, %s5
  %9 = sst [smem:[#allocation2]] %s3
  $region1: #{tpu_custom_call.1} parent=0
    #allocation3 [shape = 'u8[81920]{0}', space=vmem, size = 0x14000, scoped, tag = 'input window, operand 0, single buffered']
    #allocation4 [shape = 's32[1]{0}', space=sflag, size = 0x4, scoped, tag = 'scoped memory for tpu_custom_call.1']
    #allocation5 [shape = 's32[1]{0}', space=sflag, size = 0x4, scoped, tag = 'scoped memory for tpu_custom_call.1']
    #allocation6 [shape = 'u8[16384]{0}', space=vmem, size = 0x4000, scoped, tag = 'output window, operand 0, single buffered']
    %10 = vsyncpa [#allocation4], 0
    %11 = vsyncpa [#allocation5], 0
    // Predicated region
    $region2: #{tpu_custom_call.1} parent=1 // pred_check
      _
    $region3: #{tpu_custom_call.1} parent=1 // pred_check_branch
      %13 = sbr.rel (0) target = $region5
    $region4: #{tpu_custom_call.1} parent=1 // pred_region
      %s15 = ssub.s32 2560, 2560
      %16 = vsyncadd [#allocation4], %s15
      %s17 = sshll.u32 [#allocation3], 4
      %s18 = int_to_ptr.vmem [resolvable:$true] %s17
      %23 = dma.hbm_to_vmem [thread:$0]  %s0, 2560, %s18, [#allocation4], 512, 512, 32
    $region5: #{tpu_custom_call.1} parent=1 // pred_fallthru
      _
    // Predicated region
    $region6: #{tpu_custom_call.1} parent=1 // pred_check
      _
    $region7: #{tpu_custom_call.1} parent=1 // pred_check_branch
      %25 = sbr.rel (0) target = $region9
    $region8: #{tpu_custom_call.1} parent=1 // pred_region
      _
    $region9: #{tpu_custom_call.1} parent=1 // pred_fallthru
      _
    // Predicated region
    $region10: #{tpu_custom_call.1} parent=1 // pred_check
      _
    $region11: #{tpu_custom_call.1} parent=1 // pred_check_branch
      %27 = sbr.rel (0) target = $region13
    $region12: #{tpu_custom_call.1} parent=1 // pred_region
      _
    $region13: #{tpu_custom_call.1} parent=1 // pred_fallthru
      _
    // Predicated region
    $region14: #{tpu_custom_call.1} parent=1 // pred_check
      _
    $region15: #{tpu_custom_call.1} parent=1 // pred_check_branch
      %29 = sbr.rel (0) target = $region17
    $region16: #{tpu_custom_call.1} parent=1 // pred_region
      _
    $region17: #{tpu_custom_call.1} parent=1 // pred_fallthru
      _
    // Predicated region
    $region18: #{tpu_custom_call.1} parent=1 // pred_check
      _
    $region19: #{tpu_custom_call.1} parent=1 // pred_check_branch
      %31 = sbr.rel (0) target = $region21
    $region20: #{tpu_custom_call.1} parent=1 // pred_region
      %32 = dma.done [#allocation4], 2560
    $region21: #{tpu_custom_call.1} parent=1 // pred_fallthru
      _
    %v33 = vld [vmem:[%s1] sm:$0xff]
    %v34 = vld [vmem:[#allocation3] sm:$0xff]
    %v35 = vld [vmem:[#allocation3 + $0x8] sm:$0xff]
    %v36 = vld [vmem:[#allocation3 + $0x10] sm:$0xff]
    %v37 = vld [vmem:[#allocation3 + $0x18] sm:$0xff]
    %v38 = vld [vmem:[#allocation3 + $0x20] sm:$0xff]
    %v39 = vld [vmem:[#allocation3 + $0x28] sm:$0xff]
    %v40 = vld [vmem:[#allocation3 + $0x30] sm:$0xff]
    %v41 = vld [vmem:[#allocation3 + $0x38] sm:$0xff]
    %v42 = vld [vmem:[#allocation3 + $0x40] sm:$0xff]
    %v43 = vld [vmem:[#allocation3 + $0x48] sm:$0xff]
    %v44 = vld [vmem:[#allocation3 + $0x50] sm:$0xff]
    %v45 = vld [vmem:[#allocation3 + $0x58] sm:$0xff]
    %v46 = vld [vmem:[#allocation3 + $0x60] sm:$0xff]
    %v47 = vld [vmem:[#allocation3 + $0x68] sm:$0xff]
    %v48 = vld [vmem:[#allocation3 + $0x70] sm:$0xff]
    %v49 = vld [vmem:[#allocation3 + $0x78] sm:$0xff]
    %v50 = vld [vmem:[#allocation3 + $0x80] sm:$0xff]
    %v51 = vld [vmem:[#allocation3 + $0x88] sm:$0xff]
    %v52 = vld [vmem:[#allocation3 + $0x90] sm:$0xff]
    %v53 = vld [vmem:[#allocation3 + $0x98] sm:$0xff]
    %v54 = vld [vmem:[%s2] sm:$0xff]
    %56 = vset.pattern.permute.xlu0 0
    %57 = vperm.xlu0 %56, %v54
    %v58 = vpop.permute.xlu0 %57
    %vm60 = vcmask 326656
    %v62 = vsel %vm60, %v33, 0
    %64 = vmatprep.subr.mxu0 %v35
    %65 = vmatpush1.msra.mxu0 %v34
    %66 = vmatprep.subr.mxu0 %v39
    %67 = vmatpush1.msra.mxu0 %v38
    %68 = vmatprep.subr.mxu0 %v43
    %69 = vmatpush1.msra.mxu0 %v42
    %70 = vmatprep.subr.mxu0 %v47
    %71 = vmatpush1.msra.mxu0 %v46
    %72 = vmatprep.subr.mxu0 %v51
    %73 = vmatpush1.msra.mxu0 %v50
    %74 = vmatprep.subr.mxu0 0.0
    %75 = vmatpush1.msra.mxu0 0.0
    %76 = vmatprep.subr.mxu0 0.0
    %77 = vmatpush1.msra.mxu0 0.0
    %78 = vmatprep.subr.mxu0 0.0
    %79 = vmatpush1.msra.mxu0 0.0
    %80 = vmatprep.subr.mxu0 0.0
    %81 = vmatpush1.msra.mxu0 0.0
    %82 = vmatprep.subr.mxu0 0.0
    %83 = vmatpush1.msra.mxu0 0.0
    %84 = vmatprep.subr.mxu0 0.0
    %85 = vmatpush1.msra.mxu0 0.0
    %86 = vmatprep.subr.mxu0 0.0
    %87 = vmatpush1.msra.mxu0 0.0
    %88 = vmatprep.subr.mxu0 0.0
    %89 = vmatpush1.msra.mxu0 0.0
    %90 = vmatprep.subr.mxu0 0.0
    %91 = vmatpush1.msra.mxu0 0.0
    %92 = vmatprep.subr.mxu0 0.0
    %93 = vmatpush1.msra.mxu0 0.0
    %94 = vmatprep.subr.mxu0 0.0
    %95 = vmatpush1.msra.mxu0 0.0
    %96 = vmatprep.subr.mxu0 0.0
    %97 = vmatpush1.msra.mxu0 0.0
    %98 = vmatprep.subr.mxu0 0.0
    %99 = vmatpush1.msra.mxu0 0.0
    %100 = vmatprep.subr.mxu0 0.0
    %101 = vmatpush1.msra.mxu0 0.0
    %102 = vmatprep.subr.mxu0 0.0
    %103 = vmatpush1.msra.mxu0 0.0
    %104 = vmatprep.subr.mxu0 0.0
    %105 = vmatpush1.msra.mxu0 0.0
    %106 = vmatprep.subr.mxu0 0.0
    %107 = vmatpush1.msra.mxu0 0.0
    %108 = vmatprep.subr.mxu0 0.0
    %109 = vmatpush1.msra.mxu0 0.0
    %110 = vmatprep.subr.mxu0 0.0
    %111 = vmatpush1.msra.mxu0 0.0
    %112 = vmatprep.subr.mxu0 0.0
    %113 = vmatpush1.msra.mxu0 0.0
    %114 = vmatprep.subr.mxu0 0.0
    %115 = vmatpush1.msra.mxu0 0.0
    %116 = vmatprep.subr.mxu0 0.0
    %117 = vmatpush1.msra.mxu0 0.0
    %118 = vmatprep.subr.mxu0 0.0
    %119 = vmatpush1.msra.mxu0 0.0
    %120 = vmatprep.subr.mxu0 0.0
    %121 = vmatpush1.msra.mxu0 0.0
    %122 = vmatprep.subr.mxu0 0.0
    %123 = vmatpush1.msra.mxu0 0.0
    %124 = vmatprep.subr.mxu0 0.0
    %125 = vmatpush1.msra.mxu0 0.0
    %126 = vmatprep.subr.mxu0 0.0
    %127 = vmatpush1.msra.mxu0 0.0
    %128 = vmatprep.mubr.f32.mxu0 0.0
    %129 = vmatmul.mubr.f32.gmra.mrb[0].mxu0 %v62
    %v130 = vpop.f32.mrb[0].mxu0
    %v131 = vadd.f32 %v58, %v130
    %v132 = vpop.f32.mrb[0].mxu0
    %v133 = vadd.f32 %v58, %v132
    %134 = vdwg.mxu0
    %135 = vmatprep.subr.mxu0 %v37
    %136 = vmatpush1.msra.mxu0 %v36
    %137 = vmatprep.subr.mxu0 %v41
    %138 = vmatpush1.msra.mxu0 %v40
    %139 = vmatprep.subr.mxu0 %v45
    %140 = vmatpush1.msra.mxu0 %v44
    %141 = vmatprep.subr.mxu0 %v49
    %142 = vmatpush1.msra.mxu0 %v48
    %143 = vmatprep.subr.mxu0 %v53
    %144 = vmatpush1.msra.mxu0 %v52
    %145 = vmatprep.subr.mxu0 0.0
    %146 = vmatpush1.msra.mxu0 0.0
    %147 = vmatprep.subr.mxu0 0.0
    %148 = vmatpush1.msra.mxu0 0.0
    %149 = vmatprep.subr.mxu0 0.0
    %150 = vmatpush1.msra.mxu0 0.0
    %151 = vmatprep.subr.mxu0 0.0
    %152 = vmatpush1.msra.mxu0 0.0
    %153 = vmatprep.subr.mxu0 0.0
    %154 = vmatpush1.msra.mxu0 0.0
    %155 = vmatprep.subr.mxu0 0.0
    %156 = vmatpush1.msra.mxu0 0.0
    %157 = vmatprep.subr.mxu0 0.0
    %158 = vmatpush1.msra.mxu0 0.0
    %159 = vmatprep.subr.mxu0 0.0
    %160 = vmatpush1.msra.mxu0 0.0
    %161 = vmatprep.subr.mxu0 0.0
    %162 = vmatpush1.msra.mxu0 0.0
    %163 = vmatprep.subr.mxu0 0.0
    %164 = vmatpush1.msra.mxu0 0.0
    %165 = vmatprep.subr.mxu0 0.0
    %166 = vmatpush1.msra.mxu0 0.0
    %167 = vmatprep.subr.mxu0 0.0
    %168 = vmatpush1.msra.mxu0 0.0
    %169 = vmatprep.subr.mxu0 0.0
    %170 = vmatpush1.msra.mxu0 0.0
    %171 = vmatprep.subr.mxu0 0.0
    %172 = vmatpush1.msra.mxu0 0.0
    %173 = vmatprep.subr.mxu0 0.0
    %174 = vmatpush1.msra.mxu0 0.0
    %175 = vmatprep.subr.mxu0 0.0
    %176 = vmatpush1.msra.mxu0 0.0
    %177 = vmatprep.subr.mxu0 0.0
    %178 = vmatpush1.msra.mxu0 0.0
    %179 = vmatprep.subr.mxu0 0.0
    %180 = vmatpush1.msra.mxu0 0.0
    %181 = vmatprep.subr.mxu0 0.0
    %182 = vmatpush1.msra.mxu0 0.0
    %183 = vmatprep.subr.mxu0 0.0
    %184 = vmatpush1.msra.mxu0 0.0
    %185 = vmatprep.subr.mxu0 0.0
    %186 = vmatpush1.msra.mxu0 0.0
    %187 = vmatprep.subr.mxu0 0.0
    %188 = vmatpush1.msra.mxu0 0.0
    %189 = vmatprep.subr.mxu0 0.0
    %190 = vmatpush1.msra.mxu0 0.0
    %191 = vmatprep.subr.mxu0 0.0
    %192 = vmatpush1.msra.mxu0 0.0
    %193 = vmatprep.subr.mxu0 0.0
    %194 = vmatpush1.msra.mxu0 0.0
    %195 = vmatprep.subr.mxu0 0.0
    %196 = vmatpush1.msra.mxu0 0.0
    %197 = vmatprep.subr.mxu0 0.0
    %198 = vmatpush1.msra.mxu0 0.0
    %199 = vmatprep.mubr.f32.mxu0 0.0
    %200 = vmatmul.mubr.f32.gmra.mrb[0].mxu0 %v62
    %v201 = vpop.f32.mrb[0].mxu0
    %v202 = vadd.f32 %v58, %v201
    %v203 = vpop.f32.mrb[0].mxu0
    %v204 = vadd.f32 %v58, %v203
    %205 = vdwg.mxu0
    %s206 = sld [smem:[#allocation2]]
    %vm207 = vcmp.ge.f32.partialorder %v131, 0.0
    %vm208 = vcmp.ge.f32.partialorder %v133, 0.0
    %vm209 = vcmp.ge.f32.partialorder %v202, 0.0
    %vm210 = vcmp.ge.f32.partialorder %v204, 0.0
    %v211 = vstv %s206
    %v212 = vmul.f32 %v211, %v131
    %v213 = vmul.f32 %v211, %v133
    %v214 = vmul.f32 %v211, %v202
    %v215 = vmul.f32 %v211, %v204
    %v216 = vsel %vm207, %v131, %v212
    %v217 = vsel %vm208, %v133, %v213
    %v218 = vsel %vm209, %v202, %v214
    %v219 = vsel %vm210, %v204, %v215
    %220 = vst [vmem:[#allocation6] sm:$0xff] %v216
    %221 = vst [vmem:[#allocation6 + $0x8] sm:$0xff] %v217
    %222 = vst [vmem:[#allocation6 + $0x10] sm:$0xff] %v218
    %223 = vst [vmem:[#allocation6 + $0x18] sm:$0xff] %v219
    // Predicated region
    $region22: #{tpu_custom_call.1} parent=1 // pred_check
      _
    $region23: #{tpu_custom_call.1} parent=1 // pred_check_branch
      %225 = sbr.rel (0) target = $region25
    $region24: #{tpu_custom_call.1} parent=1 // pred_region
      %s227 = ssub.s32 512, 512
      %228 = vsyncadd [#allocation5], %s227
      %s230 = sshll.u32 [#allocation6], 4
      %s231 = int_to_ptr.vmem [resolvable:$true] %s230
      %233 = dma.vmem_to_hbm [thread:$0]  %s231, 512, %s4, [#allocation5]
    $region25: #{tpu_custom_call.1} parent=1 // pred_fallthru
      _
    // Predicated region
    $region26: #{tpu_custom_call.1} parent=1 // pred_check
      _
    $region27: #{tpu_custom_call.1} parent=1 // pred_check_branch
      %235 = sbr.rel (0) target = $region29
    $region28: #{tpu_custom_call.1} parent=1 // pred_region
      %236 = dma.done [#allocation5], 512
    $region29: #{tpu_custom_call.1} parent=1 // pred_fallthru
      _
    %237 = vsyncpa [#allocation4], 1
    %238 = vsyncpa [#allocation5], 1

</llo_original>
